<compile_context>
chip_gen: v7x
topology: tpu7x:2x2x1
jax: 0.10.0
libtpu: 0.0.40
codegen_flags: <defaults>
</compile_context>

<pallas_src>
import functools

import jax
import jax.numpy as jnp
from jax.experimental import pallas as pl
from jax.experimental.pallas import tpu as pltpu

LANE = 128     # TPU lane width: feature dims padded to a multiple of this
SUBLANE = 8    # f32 sublane granularity: batch tiles padded to a multiple


# ----------------------------------------------------------------------------
# Fused MLP kernel: every Linear (+ tanh on hidden layers) in one body.
# Refs: (x_ref, w0, b0, w1, b1, ..., w_{L-1}, b_{L-1}, o_ref)
# ----------------------------------------------------------------------------
def _mlp_kernel(x_ref, *refs, num_layers: int):
    o_ref = refs[-1]
    h = x_ref[...]                                   # (TILE_N, feat) f32
    for i in range(num_layers):
        w = refs[2 * i][...]                         # (feat, feat), zero-padded
        b = refs[2 * i + 1][...]                     # (1, feat),   zero-padded
        h = jnp.dot(h, w, preferred_element_type=jnp.float32) + b
        if 0 < i < num_layers - 1:                   # tanh only after hidden layers
            h = jnp.tanh(h)                          # EUP slot; hidden behind MXU work
    o_ref[...] = h.astype(o_ref.dtype)               # lane-dense (TILE_N, feat) store


# ----------------------------------------------------------------------------
# Parameter init (matches torch.nn.init.xavier_normal_ + zero bias) and padding
# ----------------------------------------------------------------------------
def xavier_normal(key, fan_in, fan_out):
    std = jnp.sqrt(2.0 / (fan_in + fan_out))
    # stored transposed relative to PyTorch: (in, out) so y = x @ W + b
    return std * jax.random.normal(key, (fan_in, fan_out), dtype=jnp.float32)


def init_net_params(key, input_size, layers, output_size):
    dims = [input_size] + list(layers) + [output_size]
    params = []
    for i in range(len(dims) - 1):
        key, sub = jax.random.split(key)
        w = xavier_normal(sub, dims[i], dims[i + 1])
        b = jnp.zeros((dims[i + 1],), dtype=jnp.float32)
        params.append((w, b))
    return params


def _round_up(x, m):
    return ((x + m - 1) // m) * m


def pad_net_params(params):
    """Zero-pad weights/biases once, at init time, to a shared lane-aligned
    (feat, feat) / (1, feat) shape. Zero padding keeps the math exact."""
    dims = [params[0][0].shape[0]] + [w.shape[1] for w, _ in params]
    feat = _round_up(max(dims), LANE)
    flat = []
    for w, b in params:
        wp = jnp.pad(w, ((0, feat - w.shape[0]), (0, feat - w.shape[1])))
        bp = jnp.pad(b.reshape(1, -1), ((0, 0), (0, feat - b.shape[0])))
        flat += [wp, bp]
    meta = dict(num_layers=len(params), feat=feat,
                in_dim=params[0][0].shape[0], out_dim=params[-1][0].shape[1])
    return flat, meta


# ----------------------------------------------------------------------------
# Forward pass: one pallas_call, batch tiled, weights resident in VMEM
# ----------------------------------------------------------------------------
def net_forward_pallas(flat_params, meta, x, *, tile_n=1024):
    num_layers, feat = meta["num_layers"], meta["feat"]
    n, in_dim = x.shape
    assert in_dim == meta["in_dim"]

    # Batch tile: multiple of 8 sublanes, capped by the (padded) batch itself.
    tile_n = max(SUBLANE, min(tile_n, _round_up(n, SUBLANE)))
    n_pad = _round_up(n, tile_n)
    xp = jnp.pad(x.astype(jnp.float32), ((0, n_pad - n), (0, feat - in_dim)))

    in_specs = [pl.BlockSpec((tile_n, feat), lambda i: (i, 0))]     # x: tiled over batch
    for _ in range(num_layers):
        in_specs.append(pl.BlockSpec((feat, feat), lambda i: (0, 0)))  # weight: resident
        in_specs.append(pl.BlockSpec((1, feat), lambda i: (0, 0)))     # bias:   resident

    kernel = functools.partial(_mlp_kernel, num_layers=num_layers)
    out_pad = pl.pallas_call(
        kernel,
        out_shape=jax.ShapeDtypeStruct((n_pad, feat), jnp.float32),
        grid_spec=pl.GridSpec(
            grid=(n_pad // tile_n,),
            in_specs=in_specs,
            out_specs=pl.BlockSpec((tile_n, feat), lambda i: (i, 0)),
        ),
        compiler_params=pltpu.CompilerParams(
            dimension_semantics=("parallel",),        # shard batch across v7x's 2 TCs
            vmem_limit_bytes=32 * 1024 * 1024,        # plenty of headroom, safe on v7x
        ),
    )(xp, *flat_params)

    # Slice the lane-dense padded slab back to (batch, output_size) outside.
    return out_pad[:n, :meta["out_dim"]]


# ----------------------------------------------------------------------------
# Pure-JAX reference for correctness check
# ----------------------------------------------------------------------------
def net_forward_ref(params, x):
    w, b = params[0]
    out = x @ w + b
    for w, b in params[1:-1]:
        out = jnp.tanh(out @ w + b)
    w, b = params[-1]
    return out @ w + b


if __name__ == "__main__":
    input_size = 2          # e.g. 2-D Poisson problem coordinates (x, y)
    layers = [32, 32, 32]   # hidden widths
    output_size = 1
    batch = 8

    key = jax.random.PRNGKey(0)
    key_p, key_x = jax.random.split(key)
    params = init_net_params(key_p, input_size, layers, output_size)
    flat_params, meta = pad_net_params(params)
    tx = jax.random.normal(key_x, (batch, input_size), dtype=jnp.float32)

    out = net_forward_pallas(flat_params, meta, tx)
    out = jax.block_until_ready(out)

    ref = net_forward_ref(params, tx)
    assert out.shape == (batch, output_size), out.shape
    assert jnp.allclose(out, ref, atol=1e-5, rtol=1e-5), (out, ref)

    print("KERNEL_OK")
</pallas_src>

<mosaic_0001>
module attributes {stable_mosaic.version = 11 : i64} {
  func.func @_mlp_kernel(%arg0: i32, %arg1: memref<8x128xf32, #tpu.memory_space<vmem>>, %arg2: memref<128x128xf32, #tpu.memory_space<vmem>>, %arg3: memref<1x128xf32, #tpu.memory_space<vmem>>, %arg4: memref<128x128xf32, #tpu.memory_space<vmem>>, %arg5: memref<1x128xf32, #tpu.memory_space<vmem>>, %arg6: memref<128x128xf32, #tpu.memory_space<vmem>>, %arg7: memref<1x128xf32, #tpu.memory_space<vmem>>, %arg8: memref<128x128xf32, #tpu.memory_space<vmem>>, %arg9: memref<1x128xf32, #tpu.memory_space<vmem>>, %arg10: memref<8x128xf32, #tpu.memory_space<vmem>>) attributes {dimension_semantics = [#tpu.dimension_semantics<parallel>], iteration_bounds = array<i64: 1>, scalar_prefetch = 0 : i64, scratch_operands = 0 : i64, tpu.core_type = #tpu.core_type<tc>, window_params = [{transform_indices = @transform_0, window_bounds = array<i64: 8, 128>}, {pipeline_mode = #tpu.pipeline_mode<synchronous>, transform_indices = @transform_1, window_bounds = array<i64: 128, 128>}, {pipeline_mode = #tpu.pipeline_mode<synchronous>, transform_indices = @transform_2, window_bounds = array<i64: 1, 128>}, {pipeline_mode = #tpu.pipeline_mode<synchronous>, transform_indices = @transform_3, window_bounds = array<i64: 128, 128>}, {pipeline_mode = #tpu.pipeline_mode<synchronous>, transform_indices = @transform_4, window_bounds = array<i64: 1, 128>}, {pipeline_mode = #tpu.pipeline_mode<synchronous>, transform_indices = @transform_5, window_bounds = array<i64: 128, 128>}, {pipeline_mode = #tpu.pipeline_mode<synchronous>, transform_indices = @transform_6, window_bounds = array<i64: 1, 128>}, {pipeline_mode = #tpu.pipeline_mode<synchronous>, transform_indices = @transform_7, window_bounds = array<i64: 128, 128>}, {pipeline_mode = #tpu.pipeline_mode<synchronous>, transform_indices = @transform_8, window_bounds = array<i64: 1, 128>}, {transform_indices = @transform_9, window_bounds = array<i64: 8, 128>}]} {
    %c0 = arith.constant 0 : index
    %c0_0 = arith.constant 0 : index
    %0 = vector.load %arg1[%c0, %c0_0] : memref<8x128xf32, #tpu.memory_space<vmem>>, vector<8x128xf32>
    %c0_1 = arith.constant 0 : index
    %c0_2 = arith.constant 0 : index
    %1 = vector.load %arg2[%c0_1, %c0_2] : memref<128x128xf32, #tpu.memory_space<vmem>>, vector<128x128xf32>
    %c0_3 = arith.constant 0 : index
    %c0_4 = arith.constant 0 : index
    %2 = vector.load %arg3[%c0_3, %c0_4] : memref<1x128xf32, #tpu.memory_space<vmem>>, vector<1x128xf32>
    %cst = arith.constant dense<0.000000e+00> : vector<8x128xf32>
    %3 = tpu.matmul %0, %1, %cst {dimension_numbers = #tpu.dot_dimension_numbers<[1], [0], [0], [1], [0, 0, 1, 1], [], []>} : vector<8x128xf32>, vector<128x128xf32>, vector<8x128xf32> -> vector<8x128xf32>
    %4 = vector.broadcast %2 : vector<1x128xf32> to vector<8x128xf32>
    %5 = arith.addf %3, %4 : vector<8x128xf32>
    %c0_5 = arith.constant 0 : index
    %c0_6 = arith.constant 0 : index
    %6 = vector.load %arg4[%c0_5, %c0_6] : memref<128x128xf32, #tpu.memory_space<vmem>>, vector<128x128xf32>
    %c0_7 = arith.constant 0 : index
    %c0_8 = arith.constant 0 : index
    %7 = vector.load %arg5[%c0_7, %c0_8] : memref<1x128xf32, #tpu.memory_space<vmem>>, vector<1x128xf32>
    %cst_9 = arith.constant dense<0.000000e+00> : vector<8x128xf32>
    %8 = tpu.matmul %5, %6, %cst_9 {dimension_numbers = #tpu.dot_dimension_numbers<[1], [0], [0], [1], [0, 0, 1, 1], [], []>} : vector<8x128xf32>, vector<128x128xf32>, vector<8x128xf32> -> vector<8x128xf32>
    %9 = vector.broadcast %7 : vector<1x128xf32> to vector<8x128xf32>
    %10 = arith.addf %8, %9 : vector<8x128xf32>
    %11 = math.tanh %10 : vector<8x128xf32>
    %c0_10 = arith.constant 0 : index
    %c0_11 = arith.constant 0 : index
    %12 = vector.load %arg6[%c0_10, %c0_11] : memref<128x128xf32, #tpu.memory_space<vmem>>, vector<128x128xf32>
    %c0_12 = arith.constant 0 : index
    %c0_13 = arith.constant 0 : index
    %13 = vector.load %arg7[%c0_12, %c0_13] : memref<1x128xf32, #tpu.memory_space<vmem>>, vector<1x128xf32>
    %cst_14 = arith.constant dense<0.000000e+00> : vector<8x128xf32>
    %14 = tpu.matmul %11, %12, %cst_14 {dimension_numbers = #tpu.dot_dimension_numbers<[1], [0], [0], [1], [0, 0, 1, 1], [], []>} : vector<8x128xf32>, vector<128x128xf32>, vector<8x128xf32> -> vector<8x128xf32>
    %15 = vector.broadcast %13 : vector<1x128xf32> to vector<8x128xf32>
    %16 = arith.addf %14, %15 : vector<8x128xf32>
    %17 = math.tanh %16 : vector<8x128xf32>
    %c0_15 = arith.constant 0 : index
    %c0_16 = arith.constant 0 : index
    %18 = vector.load %arg8[%c0_15, %c0_16] : memref<128x128xf32, #tpu.memory_space<vmem>>, vector<128x128xf32>
    %c0_17 = arith.constant 0 : index
    %c0_18 = arith.constant 0 : index
    %19 = vector.load %arg9[%c0_17, %c0_18] : memref<1x128xf32, #tpu.memory_space<vmem>>, vector<1x128xf32>
    %cst_19 = arith.constant dense<0.000000e+00> : vector<8x128xf32>
    %20 = tpu.matmul %17, %18, %cst_19 {dimension_numbers = #tpu.dot_dimension_numbers<[1], [0], [0], [1], [0, 0, 1, 1], [], []>} : vector<8x128xf32>, vector<128x128xf32>, vector<8x128xf32> -> vector<8x128xf32>
    %21 = vector.broadcast %19 : vector<1x128xf32> to vector<8x128xf32>
    %22 = arith.addf %20, %21 : vector<8x128xf32>
    %c0_20 = arith.constant 0 : index
    %c0_21 = arith.constant 0 : index
    %23 = vector.load %arg10[%c0_20, %c0_21] : memref<8x128xf32, #tpu.memory_space<vmem>>, vector<8x128xf32>
    tpu.vector_store %arg10[%c0_20, %c0_21], %22 {strides = array<i32>} : memref<8x128xf32, #tpu.memory_space<vmem>>, vector<8x128xf32>,
    return
  }
  func.func @transform_0(%arg0: i32) -> (i32, i32) {
    %c0_i32 = arith.constant 0 : i32
    %c0_i32_0 = arith.constant 0 : i32
    return %arg0, %c0_i32 : i32, i32
  }
  func.func @transform_1(%arg0: i32) -> (i32, i32) {
    %c0_i32 = arith.constant 0 : i32
    %c0_i32_0 = arith.constant 0 : i32
    %c0_i32_1 = arith.constant 0 : i32
    return %c0_i32, %c0_i32_0 : i32, i32
  }
  func.func @transform_2(%arg0: i32) -> (i32, i32) {
    %c0_i32 = arith.constant 0 : i32
    %c0_i32_0 = arith.constant 0 : i32
    %c0_i32_1 = arith.constant 0 : i32
    return %c0_i32, %c0_i32_0 : i32, i32
  }
  func.func @transform_3(%arg0: i32) -> (i32, i32) {
    %c0_i32 = arith.constant 0 : i32
    %c0_i32_0 = arith.constant 0 : i32
    %c0_i32_1 = arith.constant 0 : i32
    return %c0_i32, %c0_i32_0 : i32, i32
  }
  func.func @transform_4(%arg0: i32) -> (i32, i32) {
    %c0_i32 = arith.constant 0 : i32
    %c0_i32_0 = arith.constant 0 : i32
    %c0_i32_1 = arith.constant 0 : i32
    return %c0_i32, %c0_i32_0 : i32, i32
  }
  func.func @transform_5(%arg0: i32) -> (i32, i32) {
    %c0_i32 = arith.constant 0 : i32
    %c0_i32_0 = arith.constant 0 : i32
    %c0_i32_1 = arith.constant 0 : i32
    return %c0_i32, %c0_i32_0 : i32, i32
  }
  func.func @transform_6(%arg0: i32) -> (i32, i32) {
    %c0_i32 = arith.constant 0 : i32
    %c0_i32_0 = arith.constant 0 : i32
    %c0_i32_1 = arith.constant 0 : i32
    return %c0_i32, %c0_i32_0 : i32, i32
  }
  func.func @transform_7(%arg0: i32) -> (i32, i32) {
    %c0_i32 = arith.constant 0 : i32
    %c0_i32_0 = arith.constant 0 : i32
    %c0_i32_1 = arith.constant 0 : i32
    return %c0_i32, %c0_i32_0 : i32, i32
  }
  func.func @transform_8(%arg0: i32) -> (i32, i32) {
    %c0_i32 = arith.constant 0 : i32
    %c0_i32_0 = arith.constant 0 : i32
    %c0_i32_1 = arith.constant 0 : i32
    return %c0_i32, %c0_i32_0 : i32, i32
  }
  func.func @transform_9(%arg0: i32) -> (i32, i32) {
    %c0_i32 = arith.constant 0 : i32
    %c0_i32_0 = arith.constant 0 : i32
    return %arg0, %c0_i32 : i32, i32
  }
}

</mosaic_0001>

<llo_original>
// kernel: tpu_custom_call.1
$region0: #{tpu_custom_call.1}
  #allocation0 [shape = 'u32[]', space=smem, size = 0x4, offset = 0x4, fixed_abs, tag = 'smem constant byte address 0x4 - core index']
  #allocation1 [shape = 'u32[144,128]{1,0:T(1,128)}', space=vmem, size = 0x12000, scoped, tag = 'internal scratch']
  %s0 = inlined_call_operand.hbm [shape: f32[8,128], index: 0, kind: input, shape index: {}]
  %s1 = inlined_call_operand.hbm [shape: f32[128,128], index: 1, kind: input, shape index: {}]
  %s2 = inlined_call_operand.vmem [shape: f32[1,128], index: 2, kind: input, shape index: {}]
  %s3 = inlined_call_operand.hbm [shape: f32[128,128], index: 3, kind: input, shape index: {}]
  %s4 = inlined_call_operand.vmem [shape: f32[1,128], index: 4, kind: input, shape index: {}]
  %s5 = inlined_call_operand.hbm [shape: f32[128,128], index: 5, kind: input, shape index: {}]
  %s6 = inlined_call_operand.vmem [shape: f32[1,128], index: 6, kind: input, shape index: {}]
  %s7 = inlined_call_operand.hbm [shape: f32[128,128], index: 7, kind: input, shape index: {}]
  %s8 = inlined_call_operand.vmem [shape: f32[1,128], index: 8, kind: input, shape index: {}]
  %s9 = inlined_call_operand.hbm [shape: f32[8,128], index: 9, kind: output, shape index: {}]
  %s10 = sld [smem:[#allocation0]]
  $region66: #{tpu_custom_call.1} parent=0
    _
  %s12 = ssub.s32 1, %s10
  %s13 = scalar_select 0, %s12, %s10
  $region1: #{tpu_custom_call.1} parent=0
    #allocation2 [shape = 'u8[4096]{0}', space=vmem, size = 0x1000, scoped, tag = 'input window, operand 0, single buffered']
    #allocation3 [shape = 's32[1]{0}', space=sflag, size = 0x4, scoped, tag = 'scoped memory for tpu_custom_call.1']
    #allocation4 [shape = 's32[1]{0}', space=sflag, size = 0x4, scoped, tag = 'scoped memory for tpu_custom_call.1']
    #allocation5 [shape = 'u8[65536]{0}', space=vmem, size = 0x10000, scoped, tag = 'input window, operand 1, single buffered']
    #allocation6 [shape = 's32[1]{0}', space=sflag, size = 0x4, scoped, tag = 'scoped memory for tpu_custom_call.1']
    #allocation7 [shape = 'u8[65536]{0}', space=vmem, size = 0x10000, scoped, tag = 'input window, operand 3, single buffered']
    #allocation8 [shape = 'u8[65536]{0}', space=vmem, size = 0x10000, scoped, tag = 'input window, operand 5, single buffered']
    #allocation9 [shape = 's32[1]{0}', space=sflag, size = 0x4, scoped, tag = 'scoped memory for tpu_custom_call.1']
    #allocation10 [shape = 'u8[65536]{0}', space=vmem, size = 0x10000, scoped, tag = 'input window, operand 7, single buffered']
    #allocation11 [shape = 'u8[4096]{0}', space=vmem, size = 0x1000, scoped, tag = 'output window, operand 0, single buffered']
    %14 = vsyncpa [#allocation3], 0
    %15 = vsyncpa [#allocation6], 0
    %16 = vsyncpa [#allocation9], 0
    %17 = vsyncpa [#allocation4], 0
    // Predicated region
    $region2: #{tpu_custom_call.1} parent=1 // pred_check
      _
    $region3: #{tpu_custom_call.1} parent=1 // pred_check_branch
      %19 = sbr.rel (0) target = $region5
    $region4: #{tpu_custom_call.1} parent=1 // pred_region
      %s21 = ssub.s32 128, 128
      %22 = vsyncadd [#allocation3], %s21
      %s24 = sshll.u32 [#allocation2], 4
      %s25 = int_to_ptr.vmem [resolvable:$true] %s24
      %27 = dma.hbm_to_vmem [thread:$0]  %s0, 128, %s25, [#allocation3]
    $region5: #{tpu_custom_call.1} parent=1 // pred_fallthru
      _
    // Predicated region
    $region6: #{tpu_custom_call.1} parent=1 // pred_check
      _
    $region7: #{tpu_custom_call.1} parent=1 // pred_check_branch
      %29 = sbr.rel (0) target = $region9
    $region8: #{tpu_custom_call.1} parent=1 // pred_region
      %s31 = ssub.s32 2048, 2048
      %32 = vsyncadd [#allocation6], %s31
      %s33 = sshll.u32 [#allocation5], 4
      %s34 = int_to_ptr.vmem [resolvable:$true] %s33
      %39 = dma.hbm_to_vmem [thread:$0]  %s1, 2048, %s34, [#allocation6], 128, 128, 8
    $region9: #{tpu_custom_call.1} parent=1 // pred_fallthru
      _
    // Predicated region
    $region10: #{tpu_custom_call.1} parent=1 // pred_check
      _
    $region11: #{tpu_custom_call.1} parent=1 // pred_check_branch
      %41 = sbr.rel (0) target = $region13
    $region12: #{tpu_custom_call.1} parent=1 // pred_region
      _
    $region13: #{tpu_custom_call.1} parent=1 // pred_fallthru
      _
    // Predicated region
    $region14: #{tpu_custom_call.1} parent=1 // pred_check
      _
    $region15: #{tpu_custom_call.1} parent=1 // pred_check_branch
      %43 = sbr.rel (0) target = $region17
    $region16: #{tpu_custom_call.1} parent=1 // pred_region
      %s45 = ssub.s32 2048, 2048
      %46 = vsyncadd [#allocation6], %s45
      %s47 = sshll.u32 [#allocation7], 4
      %s48 = int_to_ptr.vmem [resolvable:$true] %s47
      %53 = dma.hbm_to_vmem [thread:$0]  %s3, 2048, %s48, [#allocation6], 128, 128, 8
    $region17: #{tpu_custom_call.1} parent=1 // pred_fallthru
      _
    // Predicated region
    $region18: #{tpu_custom_call.1} parent=1 // pred_check
      _
    $region19: #{tpu_custom_call.1} parent=1 // pred_check_branch
      %55 = sbr.rel (0) target = $region21
    $region20: #{tpu_custom_call.1} parent=1 // pred_region
      _
    $region21: #{tpu_custom_call.1} parent=1 // pred_fallthru
      _
    // Predicated region
    $region22: #{tpu_custom_call.1} parent=1 // pred_check
      _
    $region23: #{tpu_custom_call.1} parent=1 // pred_check_branch
      %57 = sbr.rel (0) target = $region25
    $region24: #{tpu_custom_call.1} parent=1 // pred_region
      %s59 = ssub.s32 2048, 2048
      %60 = vsyncadd [#allocation9], %s59
      %s61 = sshll.u32 [#allocation8], 4
      %s62 = int_to_ptr.vmem [resolvable:$true] %s61
      %67 = dma.hbm_to_vmem [thread:$0]  %s5, 2048, %s62, [#allocation9], 128, 128, 8
    $region25: #{tpu_custom_call.1} parent=1 // pred_fallthru
      _
    // Predicated region
    $region26: #{tpu_custom_call.1} parent=1 // pred_check
      _
    $region27: #{tpu_custom_call.1} parent=1 // pred_check_branch
      %69 = sbr.rel (0) target = $region29
    $region28: #{tpu_custom_call.1} parent=1 // pred_region
      _
    $region29: #{tpu_custom_call.1} parent=1 // pred_fallthru
      _
    // Predicated region
    $region30: #{tpu_custom_call.1} parent=1 // pred_check
      _
    $region31: #{tpu_custom_call.1} parent=1 // pred_check_branch
      %71 = sbr.rel (0) target = $region33
    $region32: #{tpu_custom_call.1} parent=1 // pred_region
      %s73 = ssub.s32 2048, 2048
      %74 = vsyncadd [#allocation9], %s73
      %s75 = sshll.u32 [#allocation10], 4
      %s76 = int_to_ptr.vmem [resolvable:$true] %s75
      %81 = dma.hbm_to_vmem [thread:$0]  %s7, 2048, %s76, [#allocation9], 128, 128, 8
    $region33: #{tpu_custom_call.1} parent=1 // pred_fallthru
      _
    // Predicated region
    $region34: #{tpu_custom_call.1} parent=1 // pred_check
      _
    $region35: #{tpu_custom_call.1} parent=1 // pred_check_branch
      %83 = sbr.rel (0) target = $region37
    $region36: #{tpu_custom_call.1} parent=1 // pred_region
      _
    $region37: #{tpu_custom_call.1} parent=1 // pred_fallthru
      _
    // Predicated region
    $region38: #{tpu_custom_call.1} parent=1 // pred_check
      _
    $region39: #{tpu_custom_call.1} parent=1 // pred_check_branch
      %85 = sbr.rel (0) target = $region41
    $region40: #{tpu_custom_call.1} parent=1 // pred_region
      %86 = dma.done [#allocation3], 128
    $region41: #{tpu_custom_call.1} parent=1 // pred_fallthru
      _
    // Predicated region
    $region42: #{tpu_custom_call.1} parent=1 // pred_check
      _
    $region43: #{tpu_custom_call.1} parent=1 // pred_check_branch
      %88 = sbr.rel (0) target = $region45
    $region44: #{tpu_custom_call.1} parent=1 // pred_region
      %89 = dma.done [#allocation6], 2048
    $region45: #{tpu_custom_call.1} parent=1 // pred_fallthru
      _
    // Predicated region
    $region46: #{tpu_custom_call.1} parent=1 // pred_check
      _
    $region47: #{tpu_custom_call.1} parent=1 // pred_check_branch
      %91 = sbr.rel (0) target = $region49
    $region48: #{tpu_custom_call.1} parent=1 // pred_region
      %92 = dma.done [#allocation6], 2048
    $region49: #{tpu_custom_call.1} parent=1 // pred_fallthru
      _
    // Predicated region
    $region50: #{tpu_custom_call.1} parent=1 // pred_check
      _
    $region51: #{tpu_custom_call.1} parent=1 // pred_check_branch
      %94 = sbr.rel (0) target = $region53
    $region52: #{tpu_custom_call.1} parent=1 // pred_region
      %95 = dma.done [#allocation9], 2048
    $region53: #{tpu_custom_call.1} parent=1 // pred_fallthru
      _
    // Predicated region
    $region54: #{tpu_custom_call.1} parent=1 // pred_check
      _
    $region55: #{tpu_custom_call.1} parent=1 // pred_check_branch
      %97 = sbr.rel (0) target = $region57
    $region56: #{tpu_custom_call.1} parent=1 // pred_region
      %98 = dma.done [#allocation9], 2048
    $region57: #{tpu_custom_call.1} parent=1 // pred_fallthru
      _
    %v99 = vld [vmem:[#allocation2] sm:$0xff]
    %v100 = vld [vmem:[#allocation5] sm:$0xff]
    %v101 = vld [vmem:[#allocation5 + $0x8] sm:$0xff]
    %v102 = vld [vmem:[#allocation5 + $0x10] sm:$0xff]
    %v103 = vld [vmem:[#allocation5 + $0x18] sm:$0xff]
    %v104 = vld [vmem:[#allocation5 + $0x20] sm:$0xff]
    %v105 = vld [vmem:[#allocation5 + $0x28] sm:$0xff]
    %v106 = vld [vmem:[#allocation5 + $0x30] sm:$0xff]
    %v107 = vld [vmem:[#allocation5 + $0x38] sm:$0xff]
    %v108 = vld [vmem:[#allocation5 + $0x40] sm:$0xff]
    %v109 = vld [vmem:[#allocation5 + $0x48] sm:$0xff]
    %v110 = vld [vmem:[#allocation5 + $0x50] sm:$0xff]
    %v111 = vld [vmem:[#allocation5 + $0x58] sm:$0xff]
    %v112 = vld [vmem:[#allocation5 + $0x60] sm:$0xff]
    %v113 = vld [vmem:[#allocation5 + $0x68] sm:$0xff]
    %v114 = vld [vmem:[#allocation5 + $0x70] sm:$0xff]
    %v115 = vld [vmem:[#allocation5 + $0x78] sm:$0xff]
    %v116 = vld [vmem:[%s2] sm:$0x1]
    %v118 = vlaneseq
    %v119 = vshrl.u32 %v118, 7
    %v120 = vsub.s32 0, %v119
    %v121 = vrot.slane %v116, %v120
    %123 = vmatprep.subr.mxu0 0.0
    %124 = vmatpush1.msra.mxu0 %v100
    %125 = vmatprep.subr.mxu0 0.0
    %126 = vmatpush1.msra.mxu0 %v101
    %127 = vmatprep.subr.mxu0 0.0
    %128 = vmatpush1.msra.mxu0 %v102
    %129 = vmatprep.subr.mxu0 0.0
    %130 = vmatpush1.msra.mxu0 %v103
    %131 = vmatprep.subr.mxu0 0.0
    %132 = vmatpush1.msra.mxu0 %v104
    %133 = vmatprep.subr.mxu0 0.0
    %134 = vmatpush1.msra.mxu0 %v105
    %135 = vmatprep.subr.mxu0 0.0
    %136 = vmatpush1.msra.mxu0 %v106
    %137 = vmatprep.subr.mxu0 0.0
    %138 = vmatpush1.msra.mxu0 %v107
    %139 = vmatprep.subr.mxu0 0.0
    %140 = vmatpush1.msra.mxu0 %v108
    %141 = vmatprep.subr.mxu0 0.0
    %142 = vmatpush1.msra.mxu0 %v109
    %143 = vmatprep.subr.mxu0 0.0
    %144 = vmatpush1.msra.mxu0 %v110
    %145 = vmatprep.subr.mxu0 0.0
    %146 = vmatpush1.msra.mxu0 %v111
    %147 = vmatprep.subr.mxu0 0.0
    %148 = vmatpush1.msra.mxu0 %v112
    %149 = vmatprep.subr.mxu0 0.0
    %150 = vmatpush1.msra.mxu0 %v113
    %151 = vmatprep.subr.mxu0 0.0
    %152 = vmatpush1.msra.mxu0 %v114
    %153 = vmatprep.subr.mxu0 0.0
    %154 = vmatpush1.msra.mxu0 %v115
    %155 = vmatprep.subr.mxu0 0.0
    %156 = vmatpush1.msra.mxu0 0.0
    %157 = vmatprep.subr.mxu0 0.0
    %158 = vmatpush1.msra.mxu0 0.0
    %159 = vmatprep.subr.mxu0 0.0
    %160 = vmatpush1.msra.mxu0 0.0
    %161 = vmatprep.subr.mxu0 0.0
    %162 = vmatpush1.msra.mxu0 0.0
    %163 = vmatprep.subr.mxu0 0.0
    %164 = vmatpush1.msra.mxu0 0.0
    %165 = vmatprep.subr.mxu0 0.0
    %166 = vmatpush1.msra.mxu0 0.0
    %167 = vmatprep.subr.mxu0 0.0
    %168 = vmatpush1.msra.mxu0 0.0
    %169 = vmatprep.subr.mxu0 0.0
    %170 = vmatpush1.msra.mxu0 0.0
    %171 = vmatprep.subr.mxu0 0.0
    %172 = vmatpush1.msra.mxu0 0.0
    %173 = vmatprep.subr.mxu0 0.0
    %174 = vmatpush1.msra.mxu0 0.0
    %175 = vmatprep.subr.mxu0 0.0
    %176 = vmatpush1.msra.mxu0 0.0
    %177 = vmatprep.subr.mxu0 0.0
    %178 = vmatpush1.msra.mxu0 0.0
    %179 = vmatprep.subr.mxu0 0.0
    %180 = vmatpush1.msra.mxu0 0.0
    %181 = vmatprep.subr.mxu0 0.0
    %182 = vmatpush1.msra.mxu0 0.0
    %183 = vmatprep.subr.mxu0 0.0
    %184 = vmatpush1.msra.mxu0 0.0
    %185 = vmatprep.subr.mxu0 0.0
    %186 = vmatpush1.msra.mxu0 0.0
    %187 = vmatprep.mubr.f32.mxu0 0.0
    %188 = vmatmul.mubr.f32.gmra.mrb[0].mxu0 %v99
    %v189 = vpop.f32.mrb[0].mxu0
    %v190 = vadd.f32 %v121, %v189
    %v191 = vpop.f32.mrb[0].mxu0
    %192 = vdwg.mxu0
    %v193 = vld [vmem:[#allocation7] sm:$0xff]
    %v194 = vld [vmem:[#allocation7 + $0x8] sm:$0xff]
    %v195 = vld [vmem:[#allocation7 + $0x10] sm:$0xff]
    %v196 = vld [vmem:[#allocation7 + $0x18] sm:$0xff]
    %v197 = vld [vmem:[#allocation7 + $0x20] sm:$0xff]
    %v198 = vld [vmem:[#allocation7 + $0x28] sm:$0xff]
    %v199 = vld [vmem:[#allocation7 + $0x30] sm:$0xff]
    %v200 = vld [vmem:[#allocation7 + $0x38] sm:$0xff]
    %v201 = vld [vmem:[#allocation7 + $0x40] sm:$0xff]
    %v202 = vld [vmem:[#allocation7 + $0x48] sm:$0xff]
    %v203 = vld [vmem:[#allocation7 + $0x50] sm:$0xff]
    %v204 = vld [vmem:[#allocation7 + $0x58] sm:$0xff]
    %v205 = vld [vmem:[#allocation7 + $0x60] sm:$0xff]
    %v206 = vld [vmem:[#allocation7 + $0x68] sm:$0xff]
    %v207 = vld [vmem:[#allocation7 + $0x70] sm:$0xff]
    %v208 = vld [vmem:[#allocation7 + $0x78] sm:$0xff]
    %v209 = vld [vmem:[%s4] sm:$0x1]
    %v211 = vlaneseq
    %v212 = vshrl.u32 %v211, 7
    %v213 = vsub.s32 0, %v212
    %v214 = vrot.slane %v209, %v213
    %216 = vmatprep.subr.mxu0 0.0
    %217 = vmatpush1.msra.mxu0 %v193
    %218 = vmatprep.subr.mxu0 0.0
    %219 = vmatpush1.msra.mxu0 %v194
    %220 = vmatprep.subr.mxu0 0.0
    %221 = vmatpush1.msra.mxu0 %v195
    %222 = vmatprep.subr.mxu0 0.0
    %223 = vmatpush1.msra.mxu0 %v196
    %224 = vmatprep.subr.mxu0 0.0
    %225 = vmatpush1.msra.mxu0 %v197
    %226 = vmatprep.subr.mxu0 0.0
    %227 = vmatpush1.msra.mxu0 %v198
    %228 = vmatprep.subr.mxu0 0.0
    %229 = vmatpush1.msra.mxu0 %v199
    %230 = vmatprep.subr.mxu0 0.0
    %231 = vmatpush1.msra.mxu0 %v200
    %232 = vmatprep.subr.mxu0 0.0
    %233 = vmatpush1.msra.mxu0 %v201
    %234 = vmatprep.subr.mxu0 0.0
    %235 = vmatpush1.msra.mxu0 %v202
    %236 = vmatprep.subr.mxu0 0.0
    %237 = vmatpush1.msra.mxu0 %v203
    %238 = vmatprep.subr.mxu0 0.0
    %239 = vmatpush1.msra.mxu0 %v204
    %240 = vmatprep.subr.mxu0 0.0
    %241 = vmatpush1.msra.mxu0 %v205
    %242 = vmatprep.subr.mxu0 0.0
    %243 = vmatpush1.msra.mxu0 %v206
    %244 = vmatprep.subr.mxu0 0.0
    %245 = vmatpush1.msra.mxu0 %v207
    %246 = vmatprep.subr.mxu0 0.0
    %247 = vmatpush1.msra.mxu0 %v208
    %248 = vmatprep.subr.mxu0 0.0
    %249 = vmatpush1.msra.mxu0 0.0
    %250 = vmatprep.subr.mxu0 0.0
    %251 = vmatpush1.msra.mxu0 0.0
    %252 = vmatprep.subr.mxu0 0.0
    %253 = vmatpush1.msra.mxu0 0.0
    %254 = vmatprep.subr.mxu0 0.0
    %255 = vmatpush1.msra.mxu0 0.0
    %256 = vmatprep.subr.mxu0 0.0
    %257 = vmatpush1.msra.mxu0 0.0
    %258 = vmatprep.subr.mxu0 0.0
    %259 = vmatpush1.msra.mxu0 0.0
    %260 = vmatprep.subr.mxu0 0.0
    %261 = vmatpush1.msra.mxu0 0.0
    %262 = vmatprep.subr.mxu0 0.0
    %263 = vmatpush1.msra.mxu0 0.0
    %264 = vmatprep.subr.mxu0 0.0
    %265 = vmatpush1.msra.mxu0 0.0
    %266 = vmatprep.subr.mxu0 0.0
    %267 = vmatpush1.msra.mxu0 0.0
    %268 = vmatprep.subr.mxu0 0.0
    %269 = vmatpush1.msra.mxu0 0.0
    %270 = vmatprep.subr.mxu0 0.0
    %271 = vmatpush1.msra.mxu0 0.0
    %272 = vmatprep.subr.mxu0 0.0
    %273 = vmatpush1.msra.mxu0 0.0
    %274 = vmatprep.subr.mxu0 0.0
    %275 = vmatpush1.msra.mxu0 0.0
    %276 = vmatprep.subr.mxu0 0.0
    %277 = vmatpush1.msra.mxu0 0.0
    %278 = vmatprep.subr.mxu0 0.0
    %279 = vmatpush1.msra.mxu0 0.0
    %280 = vmatprep.mubr.f32.mxu0 0.0
    %281 = vmatmul.mubr.f32.gmra.mrb[0].mxu0 %v190
    %v282 = vpop.f32.mrb[0].mxu0
    %v283 = vadd.f32 %v214, %v282
    %v284 = vpop.f32.mrb[0].mxu0
    %285 = vdwg.mxu0
    %v286 = vtanh.pop %v283
    %v287 = vld [vmem:[#allocation8] sm:$0xff]
    %v288 = vld [vmem:[#allocation8 + $0x8] sm:$0xff]
    %v289 = vld [vmem:[#allocation8 + $0x10] sm:$0xff]
    %v290 = vld [vmem:[#allocation8 + $0x18] sm:$0xff]
    %v291 = vld [vmem:[#allocation8 + $0x20] sm:$0xff]
    %v292 = vld [vmem:[#allocation8 + $0x28] sm:$0xff]
    %v293 = vld [vmem:[#allocation8 + $0x30] sm:$0xff]
    %v294 = vld [vmem:[#allocation8 + $0x38] sm:$0xff]
    %v295 = vld [vmem:[#allocation8 + $0x40] sm:$0xff]
    %v296 = vld [vmem:[#allocation8 + $0x48] sm:$0xff]
    %v297 = vld [vmem:[#allocation8 + $0x50] sm:$0xff]
    %v298 = vld [vmem:[#allocation8 + $0x58] sm:$0xff]
    %v299 = vld [vmem:[#allocation8 + $0x60] sm:$0xff]
    %v300 = vld [vmem:[#allocation8 + $0x68] sm:$0xff]
    %v301 = vld [vmem:[#allocation8 + $0x70] sm:$0xff]
    %v302 = vld [vmem:[#allocation8 + $0x78] sm:$0xff]
    %v303 = vld [vmem:[%s6] sm:$0x1]
    %v305 = vlaneseq
    %v306 = vshrl.u32 %v305, 7
    %v307 = vsub.s32 0, %v306
    %v308 = vrot.slane %v303, %v307
    %310 = vmatprep.subr.mxu0 0.0
    %311 = vmatpush1.msra.mxu0 %v287
    %312 = vmatprep.subr.mxu0 0.0
    %313 = vmatpush1.msra.mxu0 %v288
    %314 = vmatprep.subr.mxu0 0.0
    %315 = vmatpush1.msra.mxu0 %v289
    %316 = vmatprep.subr.mxu0 0.0
    %317 = vmatpush1.msra.mxu0 %v290
    %318 = vmatprep.subr.mxu0 0.0
    %319 = vmatpush1.msra.mxu0 %v291
    %320 = vmatprep.subr.mxu0 0.0
    %321 = vmatpush1.msra.mxu0 %v292
    %322 = vmatprep.subr.mxu0 0.0
    %323 = vmatpush1.msra.mxu0 %v293
    %324 = vmatprep.subr.mxu0 0.0
    %325 = vmatpush1.msra.mxu0 %v294
    %326 = vmatprep.subr.mxu0 0.0
    %327 = vmatpush1.msra.mxu0 %v295
    %328 = vmatprep.subr.mxu0 0.0
    %329 = vmatpush1.msra.mxu0 %v296
    %330 = vmatprep.subr.mxu0 0.0
    %331 = vmatpush1.msra.mxu0 %v297
    %332 = vmatprep.subr.mxu0 0.0
    %333 = vmatpush1.msra.mxu0 %v298
    %334 = vmatprep.subr.mxu0 0.0
    %335 = vmatpush1.msra.mxu0 %v299
    %336 = vmatprep.subr.mxu0 0.0
    %337 = vmatpush1.msra.mxu0 %v300
    %338 = vmatprep.subr.mxu0 0.0
    %339 = vmatpush1.msra.mxu0 %v301
    %340 = vmatprep.subr.mxu0 0.0
    %341 = vmatpush1.msra.mxu0 %v302
    %342 = vmatprep.subr.mxu0 0.0
    %343 = vmatpush1.msra.mxu0 0.0
    %344 = vmatprep.subr.mxu0 0.0
    %345 = vmatpush1.msra.mxu0 0.0
    %346 = vmatprep.subr.mxu0 0.0
    %347 = vmatpush1.msra.mxu0 0.0
    %348 = vmatprep.subr.mxu0 0.0
    %349 = vmatpush1.msra.mxu0 0.0
    %350 = vmatprep.subr.mxu0 0.0
    %351 = vmatpush1.msra.mxu0 0.0
    %352 = vmatprep.subr.mxu0 0.0
    %353 = vmatpush1.msra.mxu0 0.0
    %354 = vmatprep.subr.mxu0 0.0
    %355 = vmatpush1.msra.mxu0 0.0
    %356 = vmatprep.subr.mxu0 0.0
    %357 = vmatpush1.msra.mxu0 0.0
    %358 = vmatprep.subr.mxu0 0.0
    %359 = vmatpush1.msra.mxu0 0.0
    %360 = vmatprep.subr.mxu0 0.0
    %361 = vmatpush1.msra.mxu0 0.0
    %362 = vmatprep.subr.mxu0 0.0
    %363 = vmatpush1.msra.mxu0 0.0
    %364 = vmatprep.subr.mxu0 0.0
    %365 = vmatpush1.msra.mxu0 0.0
    %366 = vmatprep.subr.mxu0 0.0
    %367 = vmatpush1.msra.mxu0 0.0
    %368 = vmatprep.subr.mxu0 0.0
    %369 = vmatpush1.msra.mxu0 0.0
    %370 = vmatprep.subr.mxu0 0.0
    %371 = vmatpush1.msra.mxu0 0.0
    %372 = vmatprep.subr.mxu0 0.0
    %373 = vmatpush1.msra.mxu0 0.0
    %374 = vmatprep.mubr.f32.mxu0 0.0
    %375 = vmatmul.mubr.f32.gmra.mrb[0].mxu0 %v286
    %v376 = vpop.f32.mrb[0].mxu0
    %v377 = vadd.f32 %v308, %v376
    %v378 = vpop.f32.mrb[0].mxu0
    %379 = vdwg.mxu0
    %v380 = vtanh.pop %v377
    %v381 = vld [vmem:[#allocation10] sm:$0xff]
    %v382 = vld [vmem:[#allocation10 + $0x8] sm:$0xff]
    %v383 = vld [vmem:[#allocation10 + $0x10] sm:$0xff]
    %v384 = vld [vmem:[#allocation10 + $0x18] sm:$0xff]
    %v385 = vld [vmem:[#allocation10 + $0x20] sm:$0xff]
    %v386 = vld [vmem:[#allocation10 + $0x28] sm:$0xff]
    %v387 = vld [vmem:[#allocation10 + $0x30] sm:$0xff]
    %v388 = vld [vmem:[#allocation10 + $0x38] sm:$0xff]
    %v389 = vld [vmem:[#allocation10 + $0x40] sm:$0xff]
    %v390 = vld [vmem:[#allocation10 + $0x48] sm:$0xff]
    %v391 = vld [vmem:[#allocation10 + $0x50] sm:$0xff]
    %v392 = vld [vmem:[#allocation10 + $0x58] sm:$0xff]
    %v393 = vld [vmem:[#allocation10 + $0x60] sm:$0xff]
    %v394 = vld [vmem:[#allocation10 + $0x68] sm:$0xff]
    %v395 = vld [vmem:[#allocation10 + $0x70] sm:$0xff]
    %v396 = vld [vmem:[#allocation10 + $0x78] sm:$0xff]
    %v397 = vld [vmem:[%s8] sm:$0x1]
    %v399 = vlaneseq
    %v400 = vshrl.u32 %v399, 7
    %v401 = vsub.s32 0, %v400
    %v402 = vrot.slane %v397, %v401
    %404 = vmatprep.subr.mxu0 0.0
    %405 = vmatpush1.msra.mxu0 %v381
    %406 = vmatprep.subr.mxu0 0.0
    %407 = vmatpush1.msra.mxu0 %v382
    %408 = vmatprep.subr.mxu0 0.0
    %409 = vmatpush1.msra.mxu0 %v383
    %410 = vmatprep.subr.mxu0 0.0
    %411 = vmatpush1.msra.mxu0 %v384
    %412 = vmatprep.subr.mxu0 0.0
    %413 = vmatpush1.msra.mxu0 %v385
    %414 = vmatprep.subr.mxu0 0.0
    %415 = vmatpush1.msra.mxu0 %v386
    %416 = vmatprep.subr.mxu0 0.0
    %417 = vmatpush1.msra.mxu0 %v387
    %418 = vmatprep.subr.mxu0 0.0
    %419 = vmatpush1.msra.mxu0 %v388
    %420 = vmatprep.subr.mxu0 0.0
    %421 = vmatpush1.msra.mxu0 %v389
    %422 = vmatprep.subr.mxu0 0.0
    %423 = vmatpush1.msra.mxu0 %v390
    %424 = vmatprep.subr.mxu0 0.0
    %425 = vmatpush1.msra.mxu0 %v391
    %426 = vmatprep.subr.mxu0 0.0
    %427 = vmatpush1.msra.mxu0 %v392
    %428 = vmatprep.subr.mxu0 0.0
    %429 = vmatpush1.msra.mxu0 %v393
    %430 = vmatprep.subr.mxu0 0.0
    %431 = vmatpush1.msra.mxu0 %v394
    %432 = vmatprep.subr.mxu0 0.0
    %433 = vmatpush1.msra.mxu0 %v395
    %434 = vmatprep.subr.mxu0 0.0
    %435 = vmatpush1.msra.mxu0 %v396
    %436 = vmatprep.subr.mxu0 0.0
    %437 = vmatpush1.msra.mxu0 0.0
    %438 = vmatprep.subr.mxu0 0.0
    %439 = vmatpush1.msra.mxu0 0.0
    %440 = vmatprep.subr.mxu0 0.0
    %441 = vmatpush1.msra.mxu0 0.0
    %442 = vmatprep.subr.mxu0 0.0
    %443 = vmatpush1.msra.mxu0 0.0
    %444 = vmatprep.subr.mxu0 0.0
    %445 = vmatpush1.msra.mxu0 0.0
    %446 = vmatprep.subr.mxu0 0.0
    %447 = vmatpush1.msra.mxu0 0.0
    %448 = vmatprep.subr.mxu0 0.0
    %449 = vmatpush1.msra.mxu0 0.0
    %450 = vmatprep.subr.mxu0 0.0
    %451 = vmatpush1.msra.mxu0 0.0
    %452 = vmatprep.subr.mxu0 0.0
    %453 = vmatpush1.msra.mxu0 0.0
    %454 = vmatprep.subr.mxu0 0.0
    %455 = vmatpush1.msra.mxu0 0.0
    %456 = vmatprep.subr.mxu0 0.0
    %457 = vmatpush1.msra.mxu0 0.0
    %458 = vmatprep.subr.mxu0 0.0
    %459 = vmatpush1.msra.mxu0 0.0
    %460 = vmatprep.subr.mxu0 0.0
    %461 = vmatpush1.msra.mxu0 0.0
    %462 = vmatprep.subr.mxu0 0.0
    %463 = vmatpush1.msra.mxu0 0.0
    %464 = vmatprep.subr.mxu0 0.0
    %465 = vmatpush1.msra.mxu0 0.0
    %466 = vmatprep.subr.mxu0 0.0
    %467 = vmatpush1.msra.mxu0 0.0
    %468 = vmatprep.mubr.f32.mxu0 0.0
    %469 = vmatmul.mubr.f32.gmra.mrb[0].mxu0 %v380
    %v470 = vpop.f32.mrb[0].mxu0
    %v471 = vadd.f32 %v402, %v470
    %v472 = vpop.f32.mrb[0].mxu0
    %473 = vdwg.mxu0
    %474 = vst [vmem:[#allocation11] sm:$0xff] %v471
    // Predicated region
    $region58: #{tpu_custom_call.1} parent=1 // pred_check
      _
    $region59: #{tpu_custom_call.1} parent=1 // pred_check_branch
      %476 = sbr.rel (0) target = $region61
    $region60: #{tpu_custom_call.1} parent=1 // pred_region
      %s478 = ssub.s32 128, 128
      %479 = vsyncadd [#allocation4], %s478
      %s481 = sshll.u32 [#allocation11], 4
      %s482 = int_to_ptr.vmem [resolvable:$true] %s481
      %484 = dma.vmem_to_hbm [thread:$0]  %s482, 128, %s9, [#allocation4]
    $region61: #{tpu_custom_call.1} parent=1 // pred_fallthru
      _
    // Predicated region
    $region62: #{tpu_custom_call.1} parent=1 // pred_check
      _
    $region63: #{tpu_custom_call.1} parent=1 // pred_check_branch
      %486 = sbr.rel (0) target = $region65
    $region64: #{tpu_custom_call.1} parent=1 // pred_region
      %487 = dma.done [#allocation4], 128
    $region65: #{tpu_custom_call.1} parent=1 // pred_fallthru
      _
    %488 = vsyncpa [#allocation3], 1
    %489 = vsyncpa [#allocation6], 1
    %490 = vsyncpa [#allocation9], 1
    %491 = vsyncpa [#allocation4], 1

</llo_original>
